<compile_context>
chip_gen: v7x
topology: tpu7x:2x2x1
jax: 0.10.0
libtpu: 0.0.40
codegen_flags: <defaults>
</compile_context>

<pallas_src>
import functools

import numpy as np
import jax
import jax.numpy as jnp
from jax.experimental import pallas as pl
from jax.experimental.pallas import tpu as pltpu


# --------------------------------------------------------------------------- #
# Kernel
# --------------------------------------------------------------------------- #
def _ubr_smooth_l1_kernel(rois_ref, pred_ref, gt_ref, out_ref,
                          *, overlap_threshold, num_gt):
    # rois_ref / pred_ref: (4, TILE_ROWS, 128)  -- roi index n -> (n//128, n%128)
    # gt_ref:              (4*G,) flat f32 in SMEM
    # out_ref:             (6, TILE_ROWS, 128)  packed [loss, mask, x1, y1, x2, y2]
    rx1 = rois_ref[0]          # (TILE_ROWS, 128) full slabs: all 8 sublanes used
    ry1 = rois_ref[1]
    rx2 = rois_ref[2]
    ry2 = rois_ref[3]
    area_r = (rx2 - rx1) * (ry2 - ry1)

    # ---- running max-IoU / matched-gt over the (small, static) gt axis ------
    # Unrolled over G: scalar gt coords come from SMEM and splat onto the
    # lanes; strict '>' keeps the FIRST maximal gt index on exact ties,
    # matching torch.max / np.argmax behaviour.
    best_iou = jnp.full_like(rx1, -1.0)
    mgx1 = jnp.zeros_like(rx1)
    mgy1 = jnp.zeros_like(rx1)
    mgx2 = jnp.zeros_like(rx1)
    mgy2 = jnp.zeros_like(rx1)
    # TODO(synk): if G ever grows beyond a few dozen, switch this Python unroll
    # to lax.fori_loop(..., unroll=k) reading gt coords from SMEM.
    for g in range(num_gt):
        gx1 = gt_ref[4 * g + 0]
        gy1 = gt_ref[4 * g + 1]
        gx2 = gt_ref[4 * g + 2]
        gy2 = gt_ref[4 * g + 3]
        iw = jnp.maximum(jnp.minimum(rx2, gx2) - jnp.maximum(rx1, gx1), 0.0)
        ih = jnp.maximum(jnp.minimum(ry2, gy2) - jnp.maximum(ry1, gy1), 0.0)
        inter = iw * ih
        area_g = (gx2 - gx1) * (gy2 - gy1)
        denom = jnp.maximum(area_r + area_g - inter, 1e-12)   # NaN guard
        iou = inter / denom
        take = iou > best_iou
        best_iou = jnp.where(take, iou, best_iou)
        mgx1 = jnp.where(take, gx1, mgx1)
        mgy1 = jnp.where(take, gy1, mgy1)
        mgx2 = jnp.where(take, gx2, mgx2)
        mgy2 = jnp.where(take, gy2, mgy2)

    # ---- compute_transform(rois, matched_gt)  (Faster-RCNN convention, +1) --
    ew = rx2 - rx1 + 1.0
    eh = ry2 - ry1 + 1.0
    ecx = rx1 + 0.5 * ew
    ecy = ry1 + 0.5 * eh
    gw = mgx2 - mgx1 + 1.0
    gh = mgy2 - mgy1 + 1.0
    gcx = mgx1 + 0.5 * gw
    gcy = mgy1 + 0.5 * gh
    tdx = (gcx - ecx) / ew
    tdy = (gcy - ecy) / eh
    tdw = jnp.log(gw / ew)
    tdh = jnp.log(gh / eh)

    # ---- inverse_transform(rois, bbox_pred) -> four direct full-width stores -
    dx = pred_ref[0]
    dy = pred_ref[1]
    dw = pred_ref[2]
    dh = pred_ref[3]
    pcx = dx * ew + ecx
    pcy = dy * eh + ecy
    pw = jnp.exp(dw) * ew
    ph = jnp.exp(dh) * eh

    # ---- smooth L1 (sigma = 1.0), summed over the 4 coords -------------------
    def sl1(d):
        a = jnp.abs(d)
        return jnp.where(a < 1.0, 0.5 * d * d, a - 0.5)

    loss = sl1(dx - tdx) + sl1(dy - tdy) + sl1(dw - tdw) + sl1(dh - tdh)

    # ---- packed lane-dense output: six unmasked (TILE_ROWS, 128) stores ------
    out_ref[0] = loss
    out_ref[1] = (best_iou > overlap_threshold).astype(jnp.float32)
    out_ref[2] = pcx - 0.5 * pw
    out_ref[3] = pcy - 0.5 * ph
    out_ref[4] = pcx + 0.5 * pw
    out_ref[5] = pcy + 0.5 * ph


# --------------------------------------------------------------------------- #
# Device wrapper (layout prologue + pallas_call, jitted as one dispatch)
# --------------------------------------------------------------------------- #
@functools.partial(jax.jit, static_argnums=(3,))
def _ubr_smooth_l1_device(rois, bbox_pred, gt_box, overlap_threshold):
    rois = jnp.asarray(rois, jnp.float32)
    bbox_pred = jnp.asarray(bbox_pred, jnp.float32)
    gt_box = jnp.asarray(gt_box, jnp.float32)

    N = rois.shape[0]
    G = gt_box.shape[0]

    # --- tile sizing: sublane-rows of 128 lanes each ---------------------------
    rows = pl.cdiv(N, 128)
    desired_tile_rows = 128          # 16384 rois / grid step (~1.8 MiB dbl-buffered)
    if rows <= 8:
        tile_rows = 8                # one (8, 128) slab, grid = 1
    else:
        # aim for >= 2 grid steps (v7x megacore) while keeping tiles big and
        # a multiple of 8 sublanes
        tile_rows = min(desired_tile_rows, 8 * pl.cdiv(rows, 16))
        tile_rows = 8 * pl.cdiv(tile_rows, 8)
    rows_pad = tile_rows * pl.cdiv(rows, tile_rows)
    n_pad = rows_pad * 128
    pad = n_pad - N

    # Padded rois are all-zero boxes: IoU 0 with every gt (eps-guarded denom),
    # +1 box sizes keep log/exp finite, results are sliced off on the host
    # before masking, so they never leak.
    rois_3d = jnp.pad(rois.T, ((0, 0), (0, pad))).reshape(4, rows_pad, 128)
    pred_3d = jnp.pad(bbox_pred.T, ((0, 0), (0, pad))).reshape(4, rows_pad, 128)
    gt_flat = gt_box.reshape(-1)                      # (4*G,) -> 1D SMEM (no 2D padding)

    kernel = functools.partial(_ubr_smooth_l1_kernel,
                               overlap_threshold=float(overlap_threshold),
                               num_gt=G)

    packed = pl.pallas_call(
        kernel,
        grid=(rows_pad // tile_rows,),
        in_specs=(
            pl.BlockSpec((4, tile_rows, 128), lambda i: (0, i, 0)),
            pl.BlockSpec((4, tile_rows, 128), lambda i: (0, i, 0)),
            pl.BlockSpec(memory_space=pltpu.MemorySpace.SMEM),       # gt (4*G,)
        ),
        out_specs=pl.BlockSpec((6, tile_rows, 128), lambda i: (0, i, 0)),
        out_shape=jax.ShapeDtypeStruct((6, rows_pad, 128), jnp.float32),
        compiler_params=pltpu.CompilerParams(
            dimension_semantics=("parallel",)),
    )(rois_3d, pred_3d, gt_flat)

    return packed


def ubr_smooth_l1_pallas(rois, bbox_pred, gt_box, overlap_threshold):
    """Returns (loss, num_selected, num_rois, refined_rois) like the torch module."""
    N = int(np.shape(rois)[0])
    G = int(np.shape(gt_box)[0])
    if G == 0:
        raise ValueError("gt_box must contain at least one box (G >= 1).")

    packed = _ubr_smooth_l1_device(
        jnp.asarray(rois, jnp.float32),
        jnp.asarray(bbox_pred, jnp.float32),
        jnp.asarray(gt_box, jnp.float32),
        float(overlap_threshold))
    packed = np.asarray(jax.block_until_ready(packed))   # single D2H transfer

    flat = packed.reshape(6, -1)[:, :N]     # drop padding BEFORE masking
    # Host-side compaction == PyTorch's dynamic-shape boolean masking.
    # TODO(synk): dynamic-shape boolean select has no XLA/Pallas equivalent.
    sel = flat[1] > 0.5
    loss = flat[0][sel]
    refined = flat[2:6].T[sel]              # (n_sel, 4)
    return loss, int(sel.sum()), N, refined


# --------------------------------------------------------------------------- #
# Pure numpy replica of the PyTorch forward (float32) for validation
# --------------------------------------------------------------------------- #
def _reference(rois, bbox_pred, gt_box, thr):
    r = np.asarray(rois, np.float32)
    p = np.asarray(bbox_pred, np.float32)
    g = np.asarray(gt_box, np.float32)

    ix1 = np.maximum(r[:, None, 0], g[None, :, 0])
    iy1 = np.maximum(r[:, None, 1], g[None, :, 1])
    ix2 = np.minimum(r[:, None, 2], g[None, :, 2])
    iy2 = np.minimum(r[:, None, 3], g[None, :, 3])
    inter = np.maximum(ix2 - ix1, 0) * np.maximum(iy2 - iy1, 0)
    area_r = (r[:, 2] - r[:, 0]) * (r[:, 3] - r[:, 1])
    area_g = (g[:, 2] - g[:, 0]) * (g[:, 3] - g[:, 1])
    iou = inter / (area_r[:, None] + area_g[None, :] - inter)

    max_iou = iou.max(1)
    max_idx = iou.argmax(1)
    sel = max_iou > thr
    rs, ps, mg = r[sel], p[sel], g[max_idx[sel]]

    ew = rs[:, 2] - rs[:, 0] + 1.0
    eh = rs[:, 3] - rs[:, 1] + 1.0
    ecx = rs[:, 0] + 0.5 * ew
    ecy = rs[:, 1] + 0.5 * eh
    gw = mg[:, 2] - mg[:, 0] + 1.0
    gh = mg[:, 3] - mg[:, 1] + 1.0
    gcx = mg[:, 0] + 0.5 * gw
    gcy = mg[:, 1] + 0.5 * gh
    tgt = np.stack([(gcx - ecx) / ew, (gcy - ecy) / eh,
                    np.log(gw / ew), np.log(gh / eh)], axis=1)

    pcx = ps[:, 0] * ew + ecx
    pcy = ps[:, 1] * eh + ecy
    pw = np.exp(ps[:, 2]) * ew
    ph = np.exp(ps[:, 3]) * eh
    refined = np.stack([pcx - 0.5 * pw, pcy - 0.5 * ph,
                        pcx + 0.5 * pw, pcy + 0.5 * ph], axis=1)

    d = ps - tgt
    a = np.abs(d)
    s = (a < 1.0).astype(np.float32)
    loss = (d * d * 0.5 * s + (a - 0.5) * (1.0 - s)).sum(1)
    return loss, int(sel.sum()), r.shape[0], refined


# --------------------------------------------------------------------------- #
# Test
# --------------------------------------------------------------------------- #
def _make_case(key, N, G):
    k1, k2, k3, k4 = jax.random.split(key, 4)
    gxy = jax.random.uniform(k1, (G, 2), minval=0.0, maxval=40.0)
    gwh = jax.random.uniform(k2, (G, 2), minval=10.0, maxval=40.0)
    gt_box = jnp.concatenate([gxy, gxy + gwh], axis=1).astype(jnp.float32)

    reps = (N + G - 1) // G
    base = jnp.tile(gt_box, (reps, 1))[:N]
    jitter = jax.random.uniform(k3, (N, 4), minval=-6.0, maxval=6.0)
    raw = base + jitter
    x1 = jnp.minimum(raw[:, 0], raw[:, 2]); x2 = jnp.maximum(raw[:, 0], raw[:, 2]) + 1.0
    y1 = jnp.minimum(raw[:, 1], raw[:, 3]); y2 = jnp.maximum(raw[:, 1], raw[:, 3]) + 1.0
    rois = jnp.stack([x1, y1, x2, y2], axis=1).astype(jnp.float32)

    bbox_pred = (jax.random.normal(k4, (N, 4)) * 0.1).astype(jnp.float32)
    return rois, bbox_pred, gt_box


if __name__ == "__main__":
    key = jax.random.PRNGKey(0)
    thr = 0.3

    # small case (single (8,128) slab) and a case that crosses a lane-row boundary
    for (N, G), sub in zip([(16, 4), (200, 5)], jax.random.split(key, 2)):
        rois, bbox_pred, gt_box = _make_case(sub, N, G)

        loss, n_sel, n_rois, refined = ubr_smooth_l1_pallas(
            rois, bbox_pred, gt_box, thr)
        ref_loss, ref_n_sel, ref_n_rois, ref_refined = _reference(
            rois, bbox_pred, gt_box, thr)

        assert n_rois == ref_n_rois
        assert n_sel == ref_n_sel, (N, n_sel, ref_n_sel)
        assert np.allclose(loss, ref_loss, rtol=1e-4, atol=1e-4)
        assert np.allclose(refined, ref_refined, rtol=1e-4, atol=1e-3)

    print("KERNEL_OK")
</pallas_src>

<mosaic_0001>
module attributes {stable_mosaic.version = 11 : i64} {
  func.func @_ubr_smooth_l1_kernel(%arg0: i32, %arg1: memref<4x8x128xf32, #tpu.memory_space<vmem>>, %arg2: memref<4x8x128xf32, #tpu.memory_space<vmem>>, %arg3: memref<16xf32, #tpu.memory_space<smem>>, %arg4: memref<6x8x128xf32, #tpu.memory_space<vmem>>) attributes {dimension_semantics = [#tpu.dimension_semantics<parallel>], iteration_bounds = array<i64: 1>, scalar_prefetch = 0 : i64, scratch_operands = 0 : i64, tpu.core_type = #tpu.core_type<tc>, window_params = [{transform_indices = @transform_0, window_bounds = array<i64: 4, 8, 128>}, {transform_indices = @transform_1, window_bounds = array<i64: 4, 8, 128>}, {transform_indices = @transform_2, window_bounds = array<i64: 16>}, {transform_indices = @transform_3, window_bounds = array<i64: 6, 8, 128>}]} {
    %c0 = arith.constant 0 : index
    %c0_0 = arith.constant 0 : index
    %c0_1 = arith.constant 0 : index
    %0 = vector.load %arg1[%c0, %c0_0, %c0_1] : memref<4x8x128xf32, #tpu.memory_space<vmem>>, vector<1x8x128xf32>
    %1 = vector.shape_cast %0 : vector<1x8x128xf32> to vector<8x128xf32>
    %c1 = arith.constant 1 : index
    %c0_2 = arith.constant 0 : index
    %c0_3 = arith.constant 0 : index
    %2 = vector.load %arg1[%c1, %c0_2, %c0_3] : memref<4x8x128xf32, #tpu.memory_space<vmem>>, vector<1x8x128xf32>
    %3 = vector.shape_cast %2 : vector<1x8x128xf32> to vector<8x128xf32>
    %c2 = arith.constant 2 : index
    %c0_4 = arith.constant 0 : index
    %c0_5 = arith.constant 0 : index
    %4 = vector.load %arg1[%c2, %c0_4, %c0_5] : memref<4x8x128xf32, #tpu.memory_space<vmem>>, vector<1x8x128xf32>
    %5 = vector.shape_cast %4 : vector<1x8x128xf32> to vector<8x128xf32>
    %c3 = arith.constant 3 : index
    %c0_6 = arith.constant 0 : index
    %c0_7 = arith.constant 0 : index
    %6 = vector.load %arg1[%c3, %c0_6, %c0_7] : memref<4x8x128xf32, #tpu.memory_space<vmem>>, vector<1x8x128xf32>
    %7 = vector.shape_cast %6 : vector<1x8x128xf32> to vector<8x128xf32>
    %8 = arith.subf %5, %1 : vector<8x128xf32>
    %9 = arith.subf %7, %3 : vector<8x128xf32>
    %10 = arith.mulf %8, %9 : vector<8x128xf32>
    %cst = arith.constant -1.000000e+00 : f32
    %11 = vector.broadcast %cst : f32 to vector<8x128xf32>
    %cst_8 = arith.constant 0.000000e+00 : f32
    %12 = vector.broadcast %cst_8 : f32 to vector<8x128xf32>
    %cst_9 = arith.constant 0.000000e+00 : f32
    %13 = vector.broadcast %cst_9 : f32 to vector<8x128xf32>
    %cst_10 = arith.constant 0.000000e+00 : f32
    %14 = vector.broadcast %cst_10 : f32 to vector<8x128xf32>
    %cst_11 = arith.constant 0.000000e+00 : f32
    %15 = vector.broadcast %cst_11 : f32 to vector<8x128xf32>
    %c0_12 = arith.constant 0 : index
    %16 = memref.load %arg3[%c0_12] : memref<16xf32, #tpu.memory_space<smem>>
    %c1_13 = arith.constant 1 : index
    %17 = memref.load %arg3[%c1_13] : memref<16xf32, #tpu.memory_space<smem>>
    %c2_14 = arith.constant 2 : index
    %18 = memref.load %arg3[%c2_14] : memref<16xf32, #tpu.memory_space<smem>>
    %c3_15 = arith.constant 3 : index
    %19 = memref.load %arg3[%c3_15] : memref<16xf32, #tpu.memory_space<smem>>
    %20 = vector.broadcast %18 : f32 to vector<8x128xf32>
    %21 = arith.minimumf %5, %20 : vector<8x128xf32>
    %22 = vector.broadcast %16 : f32 to vector<8x128xf32>
    %23 = arith.maximumf %1, %22 : vector<8x128xf32>
    %24 = arith.subf %21, %23 : vector<8x128xf32>
    %cst_16 = arith.constant 0.000000e+00 : f32
    %25 = vector.broadcast %cst_16 : f32 to vector<8x128xf32>
    %26 = arith.maximumf %24, %25 : vector<8x128xf32>
    %27 = vector.broadcast %19 : f32 to vector<8x128xf32>
    %28 = arith.minimumf %7, %27 : vector<8x128xf32>
    %29 = vector.broadcast %17 : f32 to vector<8x128xf32>
    %30 = arith.maximumf %3, %29 : vector<8x128xf32>
    %31 = arith.subf %28, %30 : vector<8x128xf32>
    %cst_17 = arith.constant 0.000000e+00 : f32
    %32 = vector.broadcast %cst_17 : f32 to vector<8x128xf32>
    %33 = arith.maximumf %31, %32 : vector<8x128xf32>
    %34 = arith.mulf %26, %33 : vector<8x128xf32>
    %35 = arith.subf %18, %16 : f32
    %36 = arith.subf %19, %17 : f32
    %37 = arith.mulf %35, %36 : f32
    %38 = vector.broadcast %37 : f32 to vector<8x128xf32>
    %39 = arith.addf %10, %38 : vector<8x128xf32>
    %40 = arith.subf %39, %34 : vector<8x128xf32>
    %cst_18 = arith.constant 9.99999996E-13 : f32
    %41 = vector.broadcast %cst_18 : f32 to vector<8x128xf32>
    %42 = arith.maximumf %40, %41 : vector<8x128xf32>
    %43 = arith.divf %34, %42 : vector<8x128xf32>
    %44 = arith.cmpf ogt, %43, %11 : vector<8x128xf32>
    %45 = arith.select %44, %43, %11 : vector<8x128xi1>, vector<8x128xf32>
    %46 = vector.broadcast %16 : f32 to vector<8x128xf32>
    %47 = arith.select %44, %46, %12 : vector<8x128xi1>, vector<8x128xf32>
    %48 = vector.broadcast %17 : f32 to vector<8x128xf32>
    %49 = arith.select %44, %48, %13 : vector<8x128xi1>, vector<8x128xf32>
    %50 = vector.broadcast %18 : f32 to vector<8x128xf32>
    %51 = arith.select %44, %50, %14 : vector<8x128xi1>, vector<8x128xf32>
    %52 = vector.broadcast %19 : f32 to vector<8x128xf32>
    %53 = arith.select %44, %52, %15 : vector<8x128xi1>, vector<8x128xf32>
    %c4 = arith.constant 4 : index
    %54 = memref.load %arg3[%c4] : memref<16xf32, #tpu.memory_space<smem>>
    %c5 = arith.constant 5 : index
    %55 = memref.load %arg3[%c5] : memref<16xf32, #tpu.memory_space<smem>>
    %c6 = arith.constant 6 : index
    %56 = memref.load %arg3[%c6] : memref<16xf32, #tpu.memory_space<smem>>
    %c7 = arith.constant 7 : index
    %57 = memref.load %arg3[%c7] : memref<16xf32, #tpu.memory_space<smem>>
    %58 = vector.broadcast %56 : f32 to vector<8x128xf32>
    %59 = arith.minimumf %5, %58 : vector<8x128xf32>
    %60 = vector.broadcast %54 : f32 to vector<8x128xf32>
    %61 = arith.maximumf %1, %60 : vector<8x128xf32>
    %62 = arith.subf %59, %61 : vector<8x128xf32>
    %cst_19 = arith.constant 0.000000e+00 : f32
    %63 = vector.broadcast %cst_19 : f32 to vector<8x128xf32>
    %64 = arith.maximumf %62, %63 : vector<8x128xf32>
    %65 = vector.broadcast %57 : f32 to vector<8x128xf32>
    %66 = arith.minimumf %7, %65 : vector<8x128xf32>
    %67 = vector.broadcast %55 : f32 to vector<8x128xf32>
    %68 = arith.maximumf %3, %67 : vector<8x128xf32>
    %69 = arith.subf %66, %68 : vector<8x128xf32>
    %cst_20 = arith.constant 0.000000e+00 : f32
    %70 = vector.broadcast %cst_20 : f32 to vector<8x128xf32>
    %71 = arith.maximumf %69, %70 : vector<8x128xf32>
    %72 = arith.mulf %64, %71 : vector<8x128xf32>
    %73 = arith.subf %56, %54 : f32
    %74 = arith.subf %57, %55 : f32
    %75 = arith.mulf %73, %74 : f32
    %76 = vector.broadcast %75 : f32 to vector<8x128xf32>
    %77 = arith.addf %10, %76 : vector<8x128xf32>
    %78 = arith.subf %77, %72 : vector<8x128xf32>
    %cst_21 = arith.constant 9.99999996E-13 : f32
    %79 = vector.broadcast %cst_21 : f32 to vector<8x128xf32>
    %80 = arith.maximumf %78, %79 : vector<8x128xf32>
    %81 = arith.divf %72, %80 : vector<8x128xf32>
    %82 = arith.cmpf ogt, %81, %45 : vector<8x128xf32>
    %83 = arith.select %82, %81, %45 : vector<8x128xi1>, vector<8x128xf32>
    %84 = vector.broadcast %54 : f32 to vector<8x128xf32>
    %85 = arith.select %82, %84, %47 : vector<8x128xi1>, vector<8x128xf32>
    %86 = vector.broadcast %55 : f32 to vector<8x128xf32>
    %87 = arith.select %82, %86, %49 : vector<8x128xi1>, vector<8x128xf32>
    %88 = vector.broadcast %56 : f32 to vector<8x128xf32>
    %89 = arith.select %82, %88, %51 : vector<8x128xi1>, vector<8x128xf32>
    %90 = vector.broadcast %57 : f32 to vector<8x128xf32>
    %91 = arith.select %82, %90, %53 : vector<8x128xi1>, vector<8x128xf32>
    %c8 = arith.constant 8 : index
    %92 = memref.load %arg3[%c8] : memref<16xf32, #tpu.memory_space<smem>>
    %c9 = arith.constant 9 : index
    %93 = memref.load %arg3[%c9] : memref<16xf32, #tpu.memory_space<smem>>
    %c10 = arith.constant 10 : index
    %94 = memref.load %arg3[%c10] : memref<16xf32, #tpu.memory_space<smem>>
    %c11 = arith.constant 11 : index
    %95 = memref.load %arg3[%c11] : memref<16xf32, #tpu.memory_space<smem>>
    %96 = vector.broadcast %94 : f32 to vector<8x128xf32>
    %97 = arith.minimumf %5, %96 : vector<8x128xf32>
    %98 = vector.broadcast %92 : f32 to vector<8x128xf32>
    %99 = arith.maximumf %1, %98 : vector<8x128xf32>
    %100 = arith.subf %97, %99 : vector<8x128xf32>
    %cst_22 = arith.constant 0.000000e+00 : f32
    %101 = vector.broadcast %cst_22 : f32 to vector<8x128xf32>
    %102 = arith.maximumf %100, %101 : vector<8x128xf32>
    %103 = vector.broadcast %95 : f32 to vector<8x128xf32>
    %104 = arith.minimumf %7, %103 : vector<8x128xf32>
    %105 = vector.broadcast %93 : f32 to vector<8x128xf32>
    %106 = arith.maximumf %3, %105 : vector<8x128xf32>
    %107 = arith.subf %104, %106 : vector<8x128xf32>
    %cst_23 = arith.constant 0.000000e+00 : f32
    %108 = vector.broadcast %cst_23 : f32 to vector<8x128xf32>
    %109 = arith.maximumf %107, %108 : vector<8x128xf32>
    %110 = arith.mulf %102, %109 : vector<8x128xf32>
    %111 = arith.subf %94, %92 : f32
    %112 = arith.subf %95, %93 : f32
    %113 = arith.mulf %111, %112 : f32
    %114 = vector.broadcast %113 : f32 to vector<8x128xf32>
    %115 = arith.addf %10, %114 : vector<8x128xf32>
    %116 = arith.subf %115, %110 : vector<8x128xf32>
    %cst_24 = arith.constant 9.99999996E-13 : f32
    %117 = vector.broadcast %cst_24 : f32 to vector<8x128xf32>
    %118 = arith.maximumf %116, %117 : vector<8x128xf32>
    %119 = arith.divf %110, %118 : vector<8x128xf32>
    %120 = arith.cmpf ogt, %119, %83 : vector<8x128xf32>
    %121 = arith.select %120, %119, %83 : vector<8x128xi1>, vector<8x128xf32>
    %122 = vector.broadcast %92 : f32 to vector<8x128xf32>
    %123 = arith.select %120, %122, %85 : vector<8x128xi1>, vector<8x128xf32>
    %124 = vector.broadcast %93 : f32 to vector<8x128xf32>
    %125 = arith.select %120, %124, %87 : vector<8x128xi1>, vector<8x128xf32>
    %126 = vector.broadcast %94 : f32 to vector<8x128xf32>
    %127 = arith.select %120, %126, %89 : vector<8x128xi1>, vector<8x128xf32>
    %128 = vector.broadcast %95 : f32 to vector<8x128xf32>
    %129 = arith.select %120, %128, %91 : vector<8x128xi1>, vector<8x128xf32>
    %c12 = arith.constant 12 : index
    %130 = memref.load %arg3[%c12] : memref<16xf32, #tpu.memory_space<smem>>
    %c13 = arith.constant 13 : index
    %131 = memref.load %arg3[%c13] : memref<16xf32, #tpu.memory_space<smem>>
    %c14 = arith.constant 14 : index
    %132 = memref.load %arg3[%c14] : memref<16xf32, #tpu.memory_space<smem>>
    %c15 = arith.constant 15 : index
    %133 = memref.load %arg3[%c15] : memref<16xf32, #tpu.memory_space<smem>>
    %134 = vector.broadcast %132 : f32 to vector<8x128xf32>
    %135 = arith.minimumf %5, %134 : vector<8x128xf32>
    %136 = vector.broadcast %130 : f32 to vector<8x128xf32>
    %137 = arith.maximumf %1, %136 : vector<8x128xf32>
    %138 = arith.subf %135, %137 : vector<8x128xf32>
    %cst_25 = arith.constant 0.000000e+00 : f32
    %139 = vector.broadcast %cst_25 : f32 to vector<8x128xf32>
    %140 = arith.maximumf %138, %139 : vector<8x128xf32>
    %141 = vector.broadcast %133 : f32 to vector<8x128xf32>
    %142 = arith.minimumf %7, %141 : vector<8x128xf32>
    %143 = vector.broadcast %131 : f32 to vector<8x128xf32>
    %144 = arith.maximumf %3, %143 : vector<8x128xf32>
    %145 = arith.subf %142, %144 : vector<8x128xf32>
    %cst_26 = arith.constant 0.000000e+00 : f32
    %146 = vector.broadcast %cst_26 : f32 to vector<8x128xf32>
    %147 = arith.maximumf %145, %146 : vector<8x128xf32>
    %148 = arith.mulf %140, %147 : vector<8x128xf32>
    %149 = arith.subf %132, %130 : f32
    %150 = arith.subf %133, %131 : f32
    %151 = arith.mulf %149, %150 : f32
    %152 = vector.broadcast %151 : f32 to vector<8x128xf32>
    %153 = arith.addf %10, %152 : vector<8x128xf32>
    %154 = arith.subf %153, %148 : vector<8x128xf32>
    %cst_27 = arith.constant 9.99999996E-13 : f32
    %155 = vector.broadcast %cst_27 : f32 to vector<8x128xf32>
    %156 = arith.maximumf %154, %155 : vector<8x128xf32>
    %157 = arith.divf %148, %156 : vector<8x128xf32>
    %158 = arith.cmpf ogt, %157, %121 : vector<8x128xf32>
    %159 = arith.select %158, %157, %121 : vector<8x128xi1>, vector<8x128xf32>
    %160 = vector.broadcast %130 : f32 to vector<8x128xf32>
    %161 = arith.select %158, %160, %123 : vector<8x128xi1>, vector<8x128xf32>
    %162 = vector.broadcast %131 : f32 to vector<8x128xf32>
    %163 = arith.select %158, %162, %125 : vector<8x128xi1>, vector<8x128xf32>
    %164 = vector.broadcast %132 : f32 to vector<8x128xf32>
    %165 = arith.select %158, %164, %127 : vector<8x128xi1>, vector<8x128xf32>
    %166 = vector.broadcast %133 : f32 to vector<8x128xf32>
    %167 = arith.select %158, %166, %129 : vector<8x128xi1>, vector<8x128xf32>
    %168 = arith.subf %5, %1 : vector<8x128xf32>
    %cst_28 = arith.constant 1.000000e+00 : f32
    %169 = vector.broadcast %cst_28 : f32 to vector<8x128xf32>
    %170 = arith.addf %168, %169 : vector<8x128xf32>
    %171 = arith.subf %7, %3 : vector<8x128xf32>
    %cst_29 = arith.constant 1.000000e+00 : f32
    %172 = vector.broadcast %cst_29 : f32 to vector<8x128xf32>
    %173 = arith.addf %171, %172 : vector<8x128xf32>
    %cst_30 = arith.constant 5.000000e-01 : f32
    %174 = vector.broadcast %cst_30 : f32 to vector<8x128xf32>
    %175 = arith.mulf %174, %170 : vector<8x128xf32>
    %176 = arith.addf %1, %175 : vector<8x128xf32>
    %cst_31 = arith.constant 5.000000e-01 : f32
    %177 = vector.broadcast %cst_31 : f32 to vector<8x128xf32>
    %178 = arith.mulf %177, %173 : vector<8x128xf32>
    %179 = arith.addf %3, %178 : vector<8x128xf32>
    %180 = arith.subf %165, %161 : vector<8x128xf32>
    %cst_32 = arith.constant 1.000000e+00 : f32
    %181 = vector.broadcast %cst_32 : f32 to vector<8x128xf32>
    %182 = arith.addf %180, %181 : vector<8x128xf32>
    %183 = arith.subf %167, %163 : vector<8x128xf32>
    %cst_33 = arith.constant 1.000000e+00 : f32
    %184 = vector.broadcast %cst_33 : f32 to vector<8x128xf32>
    %185 = arith.addf %183, %184 : vector<8x128xf32>
    %cst_34 = arith.constant 5.000000e-01 : f32
    %186 = vector.broadcast %cst_34 : f32 to vector<8x128xf32>
    %187 = arith.mulf %186, %182 : vector<8x128xf32>
    %188 = arith.addf %161, %187 : vector<8x128xf32>
    %cst_35 = arith.constant 5.000000e-01 : f32
    %189 = vector.broadcast %cst_35 : f32 to vector<8x128xf32>
    %190 = arith.mulf %189, %185 : vector<8x128xf32>
    %191 = arith.addf %163, %190 : vector<8x128xf32>
    %192 = arith.subf %188, %176 : vector<8x128xf32>
    %193 = arith.divf %192, %170 : vector<8x128xf32>
    %194 = arith.subf %191, %179 : vector<8x128xf32>
    %195 = arith.divf %194, %173 : vector<8x128xf32>
    %196 = arith.divf %182, %170 : vector<8x128xf32>
    %197 = math.log %196 : vector<8x128xf32>
    %198 = arith.divf %185, %173 : vector<8x128xf32>
    %199 = math.log %198 : vector<8x128xf32>
    %c0_36 = arith.constant 0 : index
    %c0_37 = arith.constant 0 : index
    %c0_38 = arith.constant 0 : index
    %200 = vector.load %arg2[%c0_36, %c0_37, %c0_38] : memref<4x8x128xf32, #tpu.memory_space<vmem>>, vector<1x8x128xf32>
    %201 = vector.shape_cast %200 : vector<1x8x128xf32> to vector<8x128xf32>
    %c1_39 = arith.constant 1 : index
    %c0_40 = arith.constant 0 : index
    %c0_41 = arith.constant 0 : index
    %202 = vector.load %arg2[%c1_39, %c0_40, %c0_41] : memref<4x8x128xf32, #tpu.memory_space<vmem>>, vector<1x8x128xf32>
    %203 = vector.shape_cast %202 : vector<1x8x128xf32> to vector<8x128xf32>
    %c2_42 = arith.constant 2 : index
    %c0_43 = arith.constant 0 : index
    %c0_44 = arith.constant 0 : index
    %204 = vector.load %arg2[%c2_42, %c0_43, %c0_44] : memref<4x8x128xf32, #tpu.memory_space<vmem>>, vector<1x8x128xf32>
    %205 = vector.shape_cast %204 : vector<1x8x128xf32> to vector<8x128xf32>
    %c3_45 = arith.constant 3 : index
    %c0_46 = arith.constant 0 : index
    %c0_47 = arith.constant 0 : index
    %206 = vector.load %arg2[%c3_45, %c0_46, %c0_47] : memref<4x8x128xf32, #tpu.memory_space<vmem>>, vector<1x8x128xf32>
    %207 = vector.shape_cast %206 : vector<1x8x128xf32> to vector<8x128xf32>
    %208 = arith.mulf %201, %170 : vector<8x128xf32>
    %209 = arith.addf %208, %176 : vector<8x128xf32>
    %210 = arith.mulf %203, %173 : vector<8x128xf32>
    %211 = arith.addf %210, %179 : vector<8x128xf32>
    %212 = math.exp %205 : vector<8x128xf32>
    %213 = arith.mulf %212, %170 : vector<8x128xf32>
    %214 = math.exp %207 : vector<8x128xf32>
    %215 = arith.mulf %214, %173 : vector<8x128xf32>
    %216 = arith.subf %201, %193 : vector<8x128xf32>
    %217 = math.absf %216 : vector<8x128xf32>
    %cst_48 = arith.constant 1.000000e+00 : f32
    %218 = vector.broadcast %cst_48 : f32 to vector<8x128xf32>
    %219 = arith.cmpf olt, %217, %218 : vector<8x128xf32>
    %cst_49 = arith.constant 5.000000e-01 : f32
    %220 = vector.broadcast %cst_49 : f32 to vector<8x128xf32>
    %221 = arith.mulf %220, %216 : vector<8x128xf32>
    %222 = arith.mulf %221, %216 : vector<8x128xf32>
    %cst_50 = arith.constant 5.000000e-01 : f32
    %223 = vector.broadcast %cst_50 : f32 to vector<8x128xf32>
    %224 = arith.subf %217, %223 : vector<8x128xf32>
    %225 = arith.select %219, %222, %224 : vector<8x128xi1>, vector<8x128xf32>
    %226 = arith.subf %203, %195 : vector<8x128xf32>
    %227 = math.absf %226 : vector<8x128xf32>
    %cst_51 = arith.constant 1.000000e+00 : f32
    %228 = vector.broadcast %cst_51 : f32 to vector<8x128xf32>
    %229 = arith.cmpf olt, %227, %228 : vector<8x128xf32>
    %cst_52 = arith.constant 5.000000e-01 : f32
    %230 = vector.broadcast %cst_52 : f32 to vector<8x128xf32>
    %231 = arith.mulf %230, %226 : vector<8x128xf32>
    %232 = arith.mulf %231, %226 : vector<8x128xf32>
    %cst_53 = arith.constant 5.000000e-01 : f32
    %233 = vector.broadcast %cst_53 : f32 to vector<8x128xf32>
    %234 = arith.subf %227, %233 : vector<8x128xf32>
    %235 = arith.select %229, %232, %234 : vector<8x128xi1>, vector<8x128xf32>
    %236 = arith.addf %225, %235 : vector<8x128xf32>
    %237 = arith.subf %205, %197 : vector<8x128xf32>
    %238 = math.absf %237 : vector<8x128xf32>
    %cst_54 = arith.constant 1.000000e+00 : f32
    %239 = vector.broadcast %cst_54 : f32 to vector<8x128xf32>
    %240 = arith.cmpf olt, %238, %239 : vector<8x128xf32>
    %cst_55 = arith.constant 5.000000e-01 : f32
    %241 = vector.broadcast %cst_55 : f32 to vector<8x128xf32>
    %242 = arith.mulf %241, %237 : vector<8x128xf32>
    %243 = arith.mulf %242, %237 : vector<8x128xf32>
    %cst_56 = arith.constant 5.000000e-01 : f32
    %244 = vector.broadcast %cst_56 : f32 to vector<8x128xf32>
    %245 = arith.subf %238, %244 : vector<8x128xf32>
    %246 = arith.select %240, %243, %245 : vector<8x128xi1>, vector<8x128xf32>
    %247 = arith.addf %236, %246 : vector<8x128xf32>
    %248 = arith.subf %207, %199 : vector<8x128xf32>
    %249 = math.absf %248 : vector<8x128xf32>
    %cst_57 = arith.constant 1.000000e+00 : f32
    %250 = vector.broadcast %cst_57 : f32 to vector<8x128xf32>
    %251 = arith.cmpf olt, %249, %250 : vector<8x128xf32>
    %cst_58 = arith.constant 5.000000e-01 : f32
    %252 = vector.broadcast %cst_58 : f32 to vector<8x128xf32>
    %253 = arith.mulf %252, %248 : vector<8x128xf32>
    %254 = arith.mulf %253, %248 : vector<8x128xf32>
    %cst_59 = arith.constant 5.000000e-01 : f32
    %255 = vector.broadcast %cst_59 : f32 to vector<8x128xf32>
    %256 = arith.subf %249, %255 : vector<8x128xf32>
    %257 = arith.select %251, %254, %256 : vector<8x128xi1>, vector<8x128xf32>
    %258 = arith.addf %247, %257 : vector<8x128xf32>
    %c0_60 = arith.constant 0 : index
    %c0_61 = arith.constant 0 : index
    %c0_62 = arith.constant 0 : index
    %259 = vector.load %arg4[%c0_60, %c0_61, %c0_62] : memref<6x8x128xf32, #tpu.memory_space<vmem>>, vector<1x8x128xf32>
    %260 = vector.shape_cast %259 : vector<1x8x128xf32> to vector<8x128xf32>
    %261 = vector.shape_cast %258 : vector<8x128xf32> to vector<1x8x128xf32>
    tpu.vector_store %arg4[%c0_60, %c0_61, %c0_62], %261 {strides = array<i32>} : memref<6x8x128xf32, #tpu.memory_space<vmem>>, vector<1x8x128xf32>,
    %cst_63 = arith.constant 3.000000e-01 : f32
    %262 = vector.broadcast %cst_63 : f32 to vector<8x128xf32>
    %263 = arith.cmpf ogt, %159, %262 : vector<8x128xf32>
    %264 = arith.extui %263 : vector<8x128xi1> to vector<8x128xi32>
    %265 = arith.sitofp %264 : vector<8x128xi32> to vector<8x128xf32>
    %c1_64 = arith.constant 1 : index
    %c0_65 = arith.constant 0 : index
    %c0_66 = arith.constant 0 : index
    %266 = vector.load %arg4[%c1_64, %c0_65, %c0_66] : memref<6x8x128xf32, #tpu.memory_space<vmem>>, vector<1x8x128xf32>
    %267 = vector.shape_cast %266 : vector<1x8x128xf32> to vector<8x128xf32>
    %268 = vector.shape_cast %265 : vector<8x128xf32> to vector<1x8x128xf32>
    tpu.vector_store %arg4[%c1_64, %c0_65, %c0_66], %268 {strides = array<i32>} : memref<6x8x128xf32, #tpu.memory_space<vmem>>, vector<1x8x128xf32>,
    %cst_67 = arith.constant 5.000000e-01 : f32
    %269 = vector.broadcast %cst_67 : f32 to vector<8x128xf32>
    %270 = arith.mulf %269, %213 : vector<8x128xf32>
    %271 = arith.subf %209, %270 : vector<8x128xf32>
    %c2_68 = arith.constant 2 : index
    %c0_69 = arith.constant 0 : index
    %c0_70 = arith.constant 0 : index
    %272 = vector.load %arg4[%c2_68, %c0_69, %c0_70] : memref<6x8x128xf32, #tpu.memory_space<vmem>>, vector<1x8x128xf32>
    %273 = vector.shape_cast %272 : vector<1x8x128xf32> to vector<8x128xf32>
    %274 = vector.shape_cast %271 : vector<8x128xf32> to vector<1x8x128xf32>
    tpu.vector_store %arg4[%c2_68, %c0_69, %c0_70], %274 {strides = array<i32>} : memref<6x8x128xf32, #tpu.memory_space<vmem>>, vector<1x8x128xf32>,
    %cst_71 = arith.constant 5.000000e-01 : f32
    %275 = vector.broadcast %cst_71 : f32 to vector<8x128xf32>
    %276 = arith.mulf %275, %215 : vector<8x128xf32>
    %277 = arith.subf %211, %276 : vector<8x128xf32>
    %c3_72 = arith.constant 3 : index
    %c0_73 = arith.constant 0 : index
    %c0_74 = arith.constant 0 : index
    %278 = vector.load %arg4[%c3_72, %c0_73, %c0_74] : memref<6x8x128xf32, #tpu.memory_space<vmem>>, vector<1x8x128xf32>
    %279 = vector.shape_cast %278 : vector<1x8x128xf32> to vector<8x128xf32>
    %280 = vector.shape_cast %277 : vector<8x128xf32> to vector<1x8x128xf32>
    tpu.vector_store %arg4[%c3_72, %c0_73, %c0_74], %280 {strides = array<i32>} : memref<6x8x128xf32, #tpu.memory_space<vmem>>, vector<1x8x128xf32>,
    %cst_75 = arith.constant 5.000000e-01 : f32
    %281 = vector.broadcast %cst_75 : f32 to vector<8x128xf32>
    %282 = arith.mulf %281, %213 : vector<8x128xf32>
    %283 = arith.addf %209, %282 : vector<8x128xf32>
    %c4_76 = arith.constant 4 : index
    %c0_77 = arith.constant 0 : index
    %c0_78 = arith.constant 0 : index
    %284 = vector.load %arg4[%c4_76, %c0_77, %c0_78] : memref<6x8x128xf32, #tpu.memory_space<vmem>>, vector<1x8x128xf32>
    %285 = vector.shape_cast %284 : vector<1x8x128xf32> to vector<8x128xf32>
    %286 = vector.shape_cast %283 : vector<8x128xf32> to vector<1x8x128xf32>
    tpu.vector_store %arg4[%c4_76, %c0_77, %c0_78], %286 {strides = array<i32>} : memref<6x8x128xf32, #tpu.memory_space<vmem>>, vector<1x8x128xf32>,
    %cst_79 = arith.constant 5.000000e-01 : f32
    %287 = vector.broadcast %cst_79 : f32 to vector<8x128xf32>
    %288 = arith.mulf %287, %215 : vector<8x128xf32>
    %289 = arith.addf %211, %288 : vector<8x128xf32>
    %c5_80 = arith.constant 5 : index
    %c0_81 = arith.constant 0 : index
    %c0_82 = arith.constant 0 : index
    %290 = vector.load %arg4[%c5_80, %c0_81, %c0_82] : memref<6x8x128xf32, #tpu.memory_space<vmem>>, vector<1x8x128xf32>
    %291 = vector.shape_cast %290 : vector<1x8x128xf32> to vector<8x128xf32>
    %292 = vector.shape_cast %289 : vector<8x128xf32> to vector<1x8x128xf32>
    tpu.vector_store %arg4[%c5_80, %c0_81, %c0_82], %292 {strides = array<i32>} : memref<6x8x128xf32, #tpu.memory_space<vmem>>, vector<1x8x128xf32>,
    return
  }
  func.func @transform_0(%arg0: i32) -> (i32, i32, i32) {
    %c0_i32 = arith.constant 0 : i32
    %c0_i32_0 = arith.constant 0 : i32
    %c0_i32_1 = arith.constant 0 : i32
    return %c0_i32, %arg0, %c0_i32_0 : i32, i32, i32
  }
  func.func @transform_1(%arg0: i32) -> (i32, i32, i32) {
    %c0_i32 = arith.constant 0 : i32
    %c0_i32_0 = arith.constant 0 : i32
    %c0_i32_1 = arith.constant 0 : i32
    return %c0_i32, %arg0, %c0_i32_0 : i32, i32, i32
  }
  func.func @transform_2(%arg0: i32) -> i32 {
    %c0_i32 = arith.constant 0 : i32
    %c0_i32_0 = arith.constant 0 : i32
    return %c0_i32 : i32
  }
  func.func @transform_3(%arg0: i32) -> (i32, i32, i32) {
    %c0_i32 = arith.constant 0 : i32
    %c0_i32_0 = arith.constant 0 : i32
    %c0_i32_1 = arith.constant 0 : i32
    return %c0_i32, %arg0, %c0_i32_0 : i32, i32, i32
  }
}

</mosaic_0001>

<llo_original>
// kernel: _ubr_smooth_l1_device.1
$region0: #{_ubr_smooth_l1_device.1}
  #allocation0 [shape = 'u32[]', space=smem, size = 0x4, offset = 0x4, fixed_abs, tag = 'smem constant byte address 0x4 - core index']
  #allocation1 [shape = 'u32[144,128]{1,0:T(1,128)}', space=vmem, size = 0x12000, scoped, tag = 'internal scratch']
  %s0 = inlined_call_operand.vmem [shape: f32[4,8,128], index: 0, kind: input, shape index: {}]
  %s1 = inlined_call_operand.vmem [shape: f32[4,8,128], index: 1, kind: input, shape index: {}]
  %s2 = inlined_call_operand.vmem [shape: f32[16], index: 2, kind: input, shape index: {}]
  %s3 = inlined_call_operand.hbm [shape: f32[6,8,128], index: 3, kind: output, shape index: {}]
  %s4 = sld [smem:[#allocation0]]
  $region26: #{_ubr_smooth_l1_device.1} parent=0
    _
  %s6 = ssub.s32 1, %s4
  %s7 = scalar_select 0, %s6, %s4
  $region1: #{_ubr_smooth_l1_device.1} parent=0
    #allocation2 [shape = 'u8[512]{0}', space=smem, size = 0x200, scoped, tag = 'input window, operand 2, single buffered']
    #allocation3 [shape = 's32[1]{0}', space=sflag, size = 0x4, scoped, tag = 'scoped memory for _ubr_smooth_l1_device.1']
    #allocation4 [shape = 's32[1]{0}', space=sflag, size = 0x4, scoped, tag = 'scoped memory for _ubr_smooth_l1_device.1']
    #allocation5 [shape = 'u8[24576]{0}', space=vmem, size = 0x6000, scoped, tag = 'output window, operand 0, single buffered']
    %8 = vsyncpa [#allocation4], 0
    %9 = vsyncpa [#allocation3], 0
    // Predicated region
    $region2: #{_ubr_smooth_l1_device.1} parent=1 // pred_check
      _
    $region3: #{_ubr_smooth_l1_device.1} parent=1 // pred_check_branch
      %11 = sbr.rel (0) target = $region5
    $region4: #{_ubr_smooth_l1_device.1} parent=1 // pred_region
      _
    $region5: #{_ubr_smooth_l1_device.1} parent=1 // pred_fallthru
      _
    // Predicated region
    $region6: #{_ubr_smooth_l1_device.1} parent=1 // pred_check
      _
    $region7: #{_ubr_smooth_l1_device.1} parent=1 // pred_check_branch
      %13 = sbr.rel (0) target = $region9
    $region8: #{_ubr_smooth_l1_device.1} parent=1 // pred_region
      _
    $region9: #{_ubr_smooth_l1_device.1} parent=1 // pred_fallthru
      _
    // Predicated region
    $region10: #{_ubr_smooth_l1_device.1} parent=1 // pred_check
      _
    $region11: #{_ubr_smooth_l1_device.1} parent=1 // pred_check_branch
      %15 = sbr.rel (0) target = $region13
    $region12: #{_ubr_smooth_l1_device.1} parent=1 // pred_region
      %s17 = ssub.s32 16, 16
      %18 = vsyncadd [#allocation4], %s17
      %s20 = sshll.u32 %s2, 4
      %s21 = int_to_ptr.vmem [resolvable:$true] %s20
      %23 = dma.vmem_to_smem %s21, 16, [#allocation2], [#allocation4]
    $region13: #{_ubr_smooth_l1_device.1} parent=1 // pred_fallthru
      _
    // Predicated region
    $region14: #{_ubr_smooth_l1_device.1} parent=1 // pred_check
      _
    $region15: #{_ubr_smooth_l1_device.1} parent=1 // pred_check_branch
      %25 = sbr.rel (0) target = $region17
    $region16: #{_ubr_smooth_l1_device.1} parent=1 // pred_region
      %26 = dma.done [#allocation4], 16
    $region17: #{_ubr_smooth_l1_device.1} parent=1 // pred_fallthru
      _
    %27 = sfence
    %v28 = vld [vmem:[%s0] sm:$0xff]
    %s29 = scalar_lea.vmem %s0, 8
    %v30 = vld [vmem:[%s29] sm:$0xff]
    %s31 = scalar_lea.vmem %s0, 16
    %v32 = vld [vmem:[%s31] sm:$0xff]
    %s33 = scalar_lea.vmem %s0, 24
    %v34 = vld [vmem:[%s33] sm:$0xff]
    %v35 = vsub.f32 %v32, %v28
    %v36 = vsub.f32 %v34, %v30
    %v37 = vmul.f32 %v35, %v36
    %s38 = sld [smem:[#allocation2]]
    %s39 = sld [smem:[#allocation2 + $0x1]]
    %s40 = sld [smem:[#allocation2 + $0x2]]
    %s41 = sld [smem:[#allocation2 + $0x3]]
    %v42 = vstv %s40
    %v43 = vmin.f32 %v32, %v42
    %v44 = vstv %s38
    %v45 = vmax.f32 %v28, %v44
    %v46 = vsub.f32 %v43, %v45
    %v47 = vmax.f32 %v46, 0.0
    %v48 = vstv %s41
    %v49 = vmin.f32 %v34, %v48
    %v50 = vstv %s39
    %v51 = vmax.f32 %v30, %v50
    %v52 = vsub.f32 %v49, %v51
    %v53 = vmax.f32 %v52, 0.0
    %v54 = vmul.f32 %v47, %v53
    %s55 = ssub.f32 %s40, %s38
    %s56 = ssub.f32 %s41, %s39
    %s57 = smul.f32 %s55, %s56
    %v58 = vstv %s57
    %v59 = vadd.f32 %v37, %v58
    %v60 = vsub.f32 %v59, %v54
    %v61 = vmax.f32 %v60, 1e-12
    %v62 = vrcp.pop %v61
    %v63 = vmul.f32 %v54, %v62
    %vm64 = vcmp.gt.f32.partialorder %v63, -1.0
    %v65 = vsel %vm64, %v63, -1.0
    %v66 = vsel %vm64, %v44, 0.0
    %v67 = vsel %vm64, %v50, 0.0
    %v68 = vsel %vm64, %v42, 0.0
    %v69 = vsel %vm64, %v48, 0.0
    %s70 = sld [smem:[#allocation2 + $0x4]]
    %s71 = sld [smem:[#allocation2 + $0x5]]
    %s72 = sld [smem:[#allocation2 + $0x6]]
    %s73 = sld [smem:[#allocation2 + $0x7]]
    %v74 = vstv %s72
    %v75 = vmin.f32 %v32, %v74
    %v76 = vstv %s70
    %v77 = vmax.f32 %v28, %v76
    %v78 = vsub.f32 %v75, %v77
    %v79 = vmax.f32 %v78, 0.0
    %v80 = vstv %s73
    %v81 = vmin.f32 %v34, %v80
    %v82 = vstv %s71
    %v83 = vmax.f32 %v30, %v82
    %v84 = vsub.f32 %v81, %v83
    %v85 = vmax.f32 %v84, 0.0
    %v86 = vmul.f32 %v79, %v85
    %s87 = ssub.f32 %s72, %s70
    %s88 = ssub.f32 %s73, %s71
    %s89 = smul.f32 %s87, %s88
    %v90 = vstv %s89
    %v91 = vadd.f32 %v37, %v90
    %v92 = vsub.f32 %v91, %v86
    %v93 = vmax.f32 %v92, 1e-12
    %v94 = vrcp.pop %v93
    %v95 = vmul.f32 %v86, %v94
    %vm96 = vcmp.gt.f32.partialorder %v95, %v65
    %v97 = vsel %vm96, %v95, %v65
    %v98 = vsel %vm96, %v76, %v66
    %v99 = vsel %vm96, %v82, %v67
    %v100 = vsel %vm96, %v74, %v68
    %v101 = vsel %vm96, %v80, %v69
    %s102 = sld [smem:[#allocation2 + $0x8]]
    %s103 = sld [smem:[#allocation2 + $0x9]]
    %s104 = sld [smem:[#allocation2 + $0xa]]
    %s105 = sld [smem:[#allocation2 + $0xb]]
    %v106 = vstv %s104
    %v107 = vmin.f32 %v32, %v106
    %v108 = vstv %s102
    %v109 = vmax.f32 %v28, %v108
    %v110 = vsub.f32 %v107, %v109
    %v111 = vmax.f32 %v110, 0.0
    %v112 = vstv %s105
    %v113 = vmin.f32 %v34, %v112
    %v114 = vstv %s103
    %v115 = vmax.f32 %v30, %v114
    %v116 = vsub.f32 %v113, %v115
    %v117 = vmax.f32 %v116, 0.0
    %v118 = vmul.f32 %v111, %v117
    %s119 = ssub.f32 %s104, %s102
    %s120 = ssub.f32 %s105, %s103
    %s121 = smul.f32 %s119, %s120
    %v122 = vstv %s121
    %v123 = vadd.f32 %v37, %v122
    %v124 = vsub.f32 %v123, %v118
    %v125 = vmax.f32 %v124, 1e-12
    %v126 = vrcp.pop %v125
    %v127 = vmul.f32 %v118, %v126
    %vm128 = vcmp.gt.f32.partialorder %v127, %v97
    %v129 = vsel %vm128, %v127, %v97
    %v130 = vsel %vm128, %v108, %v98
    %v131 = vsel %vm128, %v114, %v99
    %v132 = vsel %vm128, %v106, %v100
    %v133 = vsel %vm128, %v112, %v101
    %s134 = sld [smem:[#allocation2 + $0xc]]
    %s135 = sld [smem:[#allocation2 + $0xd]]
    %s136 = sld [smem:[#allocation2 + $0xe]]
    %s137 = sld [smem:[#allocation2 + $0xf]]
    %v138 = vstv %s136
    %v139 = vmin.f32 %v32, %v138
    %v140 = vstv %s134
    %v141 = vmax.f32 %v28, %v140
    %v142 = vsub.f32 %v139, %v141
    %v143 = vmax.f32 %v142, 0.0
    %v144 = vstv %s137
    %v145 = vmin.f32 %v34, %v144
    %v146 = vstv %s135
    %v147 = vmax.f32 %v30, %v146
    %v148 = vsub.f32 %v145, %v147
    %v149 = vmax.f32 %v148, 0.0
    %v150 = vmul.f32 %v143, %v149
    %s151 = ssub.f32 %s136, %s134
    %s152 = ssub.f32 %s137, %s135
    %s153 = smul.f32 %s151, %s152
    %v154 = vstv %s153
    %v155 = vadd.f32 %v37, %v154
    %v156 = vsub.f32 %v155, %v150
    %v157 = vmax.f32 %v156, 1e-12
    %v158 = vrcp.pop %v157
    %v159 = vmul.f32 %v150, %v158
    %vm160 = vcmp.gt.f32.partialorder %v159, %v129
    %v161 = vsel %vm160, %v159, %v129
    %v162 = vsel %vm160, %v140, %v130
    %v163 = vsel %vm160, %v146, %v131
    %v164 = vsel %vm160, %v138, %v132
    %v165 = vsel %vm160, %v144, %v133
    %v166 = vadd.f32 %v35, 1.0
    %v167 = vadd.f32 %v36, 1.0
    %v168 = vmul.f32 %v166, 0.5
    %v169 = vadd.f32 %v28, %v168
    %v170 = vmul.f32 %v167, 0.5
    %v171 = vadd.f32 %v30, %v170
    %v172 = vsub.f32 %v164, %v162
    %v173 = vadd.f32 %v172, 1.0
    %v174 = vsub.f32 %v165, %v163
    %v175 = vadd.f32 %v174, 1.0
    %v176 = vmul.f32 %v173, 0.5
    %v177 = vadd.f32 %v162, %v176
    %v178 = vmul.f32 %v175, 0.5
    %v179 = vadd.f32 %v163, %v178
    %v180 = vsub.f32 %v177, %v169
    %v181 = vrcp.pop %v166
    %v182 = vmul.f32 %v180, %v181
    %v183 = vsub.f32 %v179, %v171
    %v184 = vrcp.pop %v167
    %v185 = vmul.f32 %v183, %v184
    %v186 = vmul.f32 %v173, %v181
    %v187 = vlog2.pop %v186
    %v188 = vmul.f32 %v187, 0.6931472
    %v189 = vmul.f32 %v175, %v184
    %v190 = vlog2.pop %v189
    %v191 = vmul.f32 %v190, 0.6931472
    %v192 = vld [vmem:[%s1] sm:$0xff]
    %s193 = scalar_lea.vmem %s1, 8
    %v194 = vld [vmem:[%s193] sm:$0xff]
    %s195 = scalar_lea.vmem %s1, 16
    %v196 = vld [vmem:[%s195] sm:$0xff]
    %s197 = scalar_lea.vmem %s1, 24
    %v198 = vld [vmem:[%s197] sm:$0xff]
    %v199 = vmul.f32 %v192, %v166
    %v200 = vadd.f32 %v199, %v169
    %v201 = vmul.f32 %v194, %v167
    %v202 = vadd.f32 %v201, %v171
    %v203 = vmul.f32 %v196, 1.442695
    %v204 = vpow.pop %v203
    %v205 = vmul.f32 %v204, %v166
    %v206 = vmul.f32 %v198, 1.442695
    %v207 = vpow.pop %v206
    %v208 = vmul.f32 %v207, %v167
    %v209 = vsub.f32 %v192, %v182
    %v210 = vand.u32 2147483647, %v209
    %vm211 = vcmp.lt.f32.partialorder %v210, 1.0
    %v212 = vmul.f32 %v209, 0.5
    %v213 = vmul.f32 %v212, %v209
    %v214 = vsub.f32 %v210, 0.5
    %v215 = vsel %vm211, %v213, %v214
    %v216 = vsub.f32 %v194, %v185
    %v217 = vand.u32 2147483647, %v216
    %vm218 = vcmp.lt.f32.partialorder %v217, 1.0
    %v219 = vmul.f32 %v216, 0.5
    %v220 = vmul.f32 %v219, %v216
    %v221 = vsub.f32 %v217, 0.5
    %v222 = vsel %vm218, %v220, %v221
    %v223 = vadd.f32 %v215, %v222
    %v224 = vsub.f32 %v196, %v188
    %v225 = vand.u32 2147483647, %v224
    %vm226 = vcmp.lt.f32.partialorder %v225, 1.0
    %v227 = vmul.f32 %v224, 0.5
    %v228 = vmul.f32 %v227, %v224
    %v229 = vsub.f32 %v225, 0.5
    %v230 = vsel %vm226, %v228, %v229
    %v231 = vadd.f32 %v223, %v230
    %v232 = vsub.f32 %v198, %v191
    %v233 = vand.u32 2147483647, %v232
    %vm234 = vcmp.lt.f32.partialorder %v233, 1.0
    %v235 = vmul.f32 %v232, 0.5
    %v236 = vmul.f32 %v235, %v232
    %v237 = vsub.f32 %v233, 0.5
    %v238 = vsel %vm234, %v236, %v237
    %v239 = vadd.f32 %v231, %v238
    %240 = vst [vmem:[#allocation5] sm:$0xff] %v239
    %vm241 = vcmp.gt.f32.partialorder %v161, 0.3
    %v242 = vsel %vm241, 1, 0
    %v243 = vcvt.s32.f32 %v242
    %s244 = scalar_lea.vmem [#allocation5], 8
    %245 = vst [vmem:[%s244] sm:$0xff] %v243
    %v246 = vmul.f32 %v205, 0.5
    %v247 = vsub.f32 %v200, %v246
    %s248 = scalar_lea.vmem [#allocation5], 16
    %249 = vst [vmem:[%s248] sm:$0xff] %v247
    %v250 = vmul.f32 %v208, 0.5
    %v251 = vsub.f32 %v202, %v250
    %s252 = scalar_lea.vmem [#allocation5], 24
    %253 = vst [vmem:[%s252] sm:$0xff] %v251
    %v254 = vadd.f32 %v200, %v246
    %s255 = scalar_lea.vmem [#allocation5], 32
    %256 = vst [vmem:[%s255] sm:$0xff] %v254
    %v257 = vadd.f32 %v202, %v250
    %s258 = scalar_lea.vmem [#allocation5], 40
    %259 = vst [vmem:[%s258] sm:$0xff] %v257
    // Predicated region
    $region18: #{_ubr_smooth_l1_device.1} parent=1 // pred_check
      _
    $region19: #{_ubr_smooth_l1_device.1} parent=1 // pred_check_branch
      %261 = sbr.rel (0) target = $region21
    $region20: #{_ubr_smooth_l1_device.1} parent=1 // pred_region
      %s263 = ssub.s32 768, 768
      %264 = vsyncadd [#allocation3], %s263
      %s265 = sshll.u32 [#allocation5], 4
      %s266 = int_to_ptr.vmem [resolvable:$true] %s265
      %271 = dma.vmem_to_hbm [thread:$0]  %s266, 768, %s3, [#allocation3], 128, 128, 8
    $region21: #{_ubr_smooth_l1_device.1} parent=1 // pred_fallthru
      _
    // Predicated region
    $region22: #{_ubr_smooth_l1_device.1} parent=1 // pred_check
      _
    $region23: #{_ubr_smooth_l1_device.1} parent=1 // pred_check_branch
      %273 = sbr.rel (0) target = $region25
    $region24: #{_ubr_smooth_l1_device.1} parent=1 // pred_region
      %274 = dma.done [#allocation3], 768
    $region25: #{_ubr_smooth_l1_device.1} parent=1 // pred_fallthru
      _
    %275 = vsyncpa [#allocation3], 1
    %276 = vsyncpa [#allocation4], 1

</llo_original>
